<compile_context>
chip_gen: v7x
topology: tpu7x:2x2x1
jax: 0.10.0
libtpu: 0.0.40
codegen_flags: <defaults>
</compile_context>

<pallas_src>
import jax
import jax.numpy as jnp
from jax.experimental import pallas as pl
from jax.experimental.pallas import tpu as pltpu

D_IN = 10
D_HID = 5
D_OUT = 2


def _round_up(a, b):
    return (a + b - 1) // b * b


def _fused_linear_kernel(x_ref, w_ref, b_ref, o_ref):
    # x_ref: (tm, D_IN)   w_ref: (D_OUT, D_IN)   b_ref: (D_OUT, 1)
    # o_ref: (D_OUT, tm)  -- lane-dense output (rows on the lane axis)
    y_t = jax.lax.dot_general(
        w_ref[...], x_ref[...],
        dimension_numbers=(((1,), (1,)), ((), ())),   # contract both D_IN dims
        preferred_element_type=jnp.float32,
    )                                                 # (D_OUT, tm), f32
    o_ref[...] = (y_t + b_ref[...]).astype(o_ref.dtype)


def simple_model_forward(x, w1, b1, w2, b2, *, tile_m=16384,
                         small_m_threshold=4096, force_pallas=False,
                         compute_dtype=None):
    """x: (B, S, D_IN). Returns (B, S, D_OUT).

    Weights follow the PyTorch nn.Linear convention W: (out, in).
    compute_dtype: optional (e.g. jnp.bfloat16) to halve HBM bytes of x/w;
    accumulation stays f32.  Wrap in jax.jit so w_fused/b_fused fold.
    """
    B, S, d_in = x.shape
    assert d_in == D_IN
    M = B * S

    # Algebraic fusion of the two linears (exact: no activation between them).
    w_fused = (w2 @ w1).astype(jnp.float32)            # (D_OUT, D_IN)
    b_fused = (w2 @ b1 + b2).astype(jnp.float32)       # (D_OUT,)

    x2d = x.reshape(M, D_IN)

    # Small-M fast path: pallas_call dispatch + pipeline prologue dwarfs the
    # work; XLA's fused dot+add is strictly faster there.
    if M < small_m_threshold and not force_pallas:
        out2d = x2d @ w_fused.T + b_fused
        return out2d.reshape(B, S, D_OUT).astype(x.dtype)

    cdt = compute_dtype if compute_dtype is not None else x2d.dtype
    x_in = x2d.astype(cdt)
    w_in = w_fused.astype(cdt)
    b_in = b_fused.reshape(D_OUT, 1)                   # bias stays f32

    # Tile selection:
    #  * tm == M (full-dim blocks) for modest M -> single step, no constraints.
    #  * otherwise balanced tiles, multiple of 128 (lane axis of the output
    #    block), >= 2 steps so v7x megacore can shard M across both TCs.
    #  Pallas handles the partial last block (masked read/write); no jnp.pad.
    min_tm = 1024
    if M <= 2 * min_tm:
        tm = M
    else:
        num_steps = max(2, pl.cdiv(M, tile_m))
        tm = _round_up(pl.cdiv(M, num_steps), 128)
    grid = (pl.cdiv(M, tm),)

    itemsize = jnp.dtype(cdt).itemsize
    cost = pl.CostEstimate(
        flops=2 * M * D_IN * D_OUT,
        transcendentals=0,
        bytes_accessed=M * D_IN * itemsize + M * D_OUT * 4
                       + D_OUT * (D_IN * itemsize + 4),
    )

    out_t = pl.pallas_call(
        _fused_linear_kernel,
        out_shape=jax.ShapeDtypeStruct((D_OUT, M), jnp.float32),
        grid=grid,
        in_specs=[
            pl.BlockSpec((tm, D_IN), lambda i: (i, 0)),      # streamed x tiles
            pl.BlockSpec((D_OUT, D_IN), lambda i: (0, 0)),   # resident fused weight
            pl.BlockSpec((D_OUT, 1), lambda i: (0, 0)),      # resident fused bias
        ],
        out_specs=pl.BlockSpec((D_OUT, tm), lambda i: (0, i)),  # lane-dense output
        compiler_params=pltpu.CompilerParams(
            dimension_semantics=("parallel",),   # megacore sharding on v7x
            vmem_limit_bytes=32 << 20,           # ~17 MiB used at tm~16.4K
        ),
        cost_estimate=cost,
    )(x_in, w_in, b_in)

    # Cheap wrapper-side transpose: only M * D_OUT elements.
    out2d = out_t.T
    return out2d.reshape(B, S, D_OUT).astype(x.dtype)


def init_params(key):
    """Deterministic params; shapes match nn.Linear (out_features, in_features)."""
    k1, k2, k3, k4 = jax.random.split(key, 4)
    bound1 = 1.0 / (D_IN ** 0.5)
    bound2 = 1.0 / (D_HID ** 0.5)
    w1 = jax.random.uniform(k1, (D_HID, D_IN), jnp.float32, -bound1, bound1)
    b1 = jax.random.uniform(k2, (D_HID,), jnp.float32, -bound1, bound1)
    w2 = jax.random.uniform(k3, (D_OUT, D_HID), jnp.float32, -bound2, bound2)
    b2 = jax.random.uniform(k4, (D_OUT,), jnp.float32, -bound2, bound2)
    return w1, b1, w2, b2


if __name__ == "__main__":
    key = jax.random.PRNGKey(0)
    kx, kp, kx2 = jax.random.split(key, 3)

    w1, b1, w2, b2 = init_params(kp)

    fwd = jax.jit(
        simple_model_forward,
        static_argnames=("tile_m", "small_m_threshold", "force_pallas",
                         "compute_dtype"),
    )

    # 1) Small shapes consistent with the module (fc1 expects 10 features);
    #    force the Pallas path so the kernel itself is exercised.
    batch, seq = 2, 8
    x = jax.random.normal(kx, (batch, seq, D_IN), dtype=jnp.float32)
    out = jax.block_until_ready(fwd(x, w1, b1, w2, b2, force_pallas=True))
    ref = (x @ w1.T + b1) @ w2.T + b2
    assert out.shape == (batch, seq, D_OUT)
    assert jnp.allclose(out, ref, atol=1e-4, rtol=1e-4), float(jnp.abs(out - ref).max())

    # 2) Larger M, not divisible by the tile: exercises the masked partial last
    #    block (no jnp.pad) and a multi-step grid.
    batch2, seq2 = 3, 3457   # M = 10371
    x2 = jax.random.normal(kx2, (batch2, seq2, D_IN), dtype=jnp.float32)
    out2 = jax.block_until_ready(
        fwd(x2, w1, b1, w2, b2, tile_m=4096, force_pallas=True))
    ref2 = (x2 @ w1.T + b1) @ w2.T + b2
    assert out2.shape == (batch2, seq2, D_OUT)
    assert jnp.allclose(out2, ref2, atol=1e-4, rtol=1e-4), float(jnp.abs(out2 - ref2).max())

    # 3) Small-M fast path (plain jnp, no pallas dispatch) for completeness.
    out3 = jax.block_until_ready(fwd(x, w1, b1, w2, b2))
    assert jnp.allclose(out3, ref, atol=1e-4, rtol=1e-4)

    print("KERNEL_OK")
</pallas_src>

<mosaic_0001>
module attributes {stable_mosaic.version = 11 : i64} {
  func.func @_fused_linear_kernel(%arg0: i32, %arg1: memref<16x10xf32, #tpu.memory_space<vmem>>, %arg2: memref<2x10xf32, #tpu.memory_space<vmem>>, %arg3: memref<2x1xf32, #tpu.memory_space<vmem>>, %arg4: memref<2x16xf32, #tpu.memory_space<vmem>>) attributes {dimension_semantics = [#tpu.dimension_semantics<parallel>], iteration_bounds = array<i64: 1>, scalar_prefetch = 0 : i64, scratch_operands = 0 : i64, tpu.core_type = #tpu.core_type<tc>, window_params = [{transform_indices = @transform_0, window_bounds = array<i64: 16, 10>}, {pipeline_mode = #tpu.pipeline_mode<synchronous>, transform_indices = @transform_1, window_bounds = array<i64: 2, 10>}, {pipeline_mode = #tpu.pipeline_mode<synchronous>, transform_indices = @transform_2, window_bounds = array<i64: 2, 1>}, {transform_indices = @transform_3, window_bounds = array<i64: 2, 16>}]} {
    %c0 = arith.constant 0 : index
    %c0_0 = arith.constant 0 : index
    %0 = vector.load %arg2[%c0, %c0_0] : memref<2x10xf32, #tpu.memory_space<vmem>>, vector<2x10xf32>
    %c0_1 = arith.constant 0 : index
    %c0_2 = arith.constant 0 : index
    %1 = vector.load %arg1[%c0_1, %c0_2] : memref<16x10xf32, #tpu.memory_space<vmem>>, vector<16x10xf32>
    %cst = arith.constant dense<0.000000e+00> : vector<2x16xf32>
    %2 = tpu.matmul %0, %1, %cst {dimension_numbers = #tpu.dot_dimension_numbers<[1], [1], [0], [0], [0, 0, 1, 0], [], []>} : vector<2x10xf32>, vector<16x10xf32>, vector<2x16xf32> -> vector<2x16xf32>
    %c0_3 = arith.constant 0 : index
    %c0_4 = arith.constant 0 : index
    %3 = vector.load %arg3[%c0_3, %c0_4] : memref<2x1xf32, #tpu.memory_space<vmem>>, vector<2x1xf32>
    %4 = vector.broadcast %3 : vector<2x1xf32> to vector<2x16xf32>
    %5 = arith.addf %2, %4 : vector<2x16xf32>
    %c0_5 = arith.constant 0 : index
    %c0_6 = arith.constant 0 : index
    %6 = vector.load %arg4[%c0_5, %c0_6] : memref<2x16xf32, #tpu.memory_space<vmem>>, vector<2x16xf32>
    tpu.vector_store %arg4[%c0_5, %c0_6], %5 {strides = array<i32>} : memref<2x16xf32, #tpu.memory_space<vmem>>, vector<2x16xf32>,
    return
  }
  func.func @transform_0(%arg0: i32) -> (i32, i32) {
    %c0_i32 = arith.constant 0 : i32
    %c0_i32_0 = arith.constant 0 : i32
    return %arg0, %c0_i32 : i32, i32
  }
  func.func @transform_1(%arg0: i32) -> (i32, i32) {
    %c0_i32 = arith.constant 0 : i32
    %c0_i32_0 = arith.constant 0 : i32
    %c0_i32_1 = arith.constant 0 : i32
    return %c0_i32, %c0_i32_0 : i32, i32
  }
  func.func @transform_2(%arg0: i32) -> (i32, i32) {
    %c0_i32 = arith.constant 0 : i32
    %c0_i32_0 = arith.constant 0 : i32
    %c0_i32_1 = arith.constant 0 : i32
    return %c0_i32, %c0_i32_0 : i32, i32
  }
  func.func @transform_3(%arg0: i32) -> (i32, i32) {
    %c0_i32 = arith.constant 0 : i32
    %c0_i32_0 = arith.constant 0 : i32
    return %c0_i32, %arg0 : i32, i32
  }
}

</mosaic_0001>

<llo_original>
// kernel: simple_model_forward.1
$region0: #{simple_model_forward.1}
  #allocation0 [shape = 'u32[]', space=smem, size = 0x4, offset = 0x4, fixed_abs, tag = 'smem constant byte address 0x4 - core index']
  #allocation1 [shape = 'u32[144,128]{1,0:T(1,128)}', space=vmem, size = 0x12000, scoped, tag = 'internal scratch']
  %s0 = inlined_call_operand.vmem [shape: f32[16,10], index: 0, kind: input, shape index: {}]
  %s1 = inlined_call_operand.vmem [shape: f32[2,10], index: 1, kind: input, shape index: {}]
  %s2 = inlined_call_operand.vmem [shape: f32[2,1], index: 2, kind: input, shape index: {}]
  %s3 = inlined_call_operand.vmem [shape: f32[2,16], index: 3, kind: output, shape index: {}]
  %s4 = sld [smem:[#allocation0]]
  $region22: #{simple_model_forward.1} parent=0
    _
  %s6 = ssub.s32 1, %s4
  %s7 = scalar_select 0, %s6, %s4
  // Predicated region
  $region2: #{simple_model_forward.1} parent=0 // pred_check
    _
  $region3: #{simple_model_forward.1} parent=0 // pred_check_branch
    %9 = sbr.rel (0) target = $region5
  $region4: #{simple_model_forward.1} parent=0 // pred_region
    _
  $region5: #{simple_model_forward.1} parent=0 // pred_fallthru
    _
  // Predicated region
  $region6: #{simple_model_forward.1} parent=0 // pred_check
    _
  $region7: #{simple_model_forward.1} parent=0 // pred_check_branch
    %11 = sbr.rel (0) target = $region9
  $region8: #{simple_model_forward.1} parent=0 // pred_region
    _
  $region9: #{simple_model_forward.1} parent=0 // pred_fallthru
    _
  // Predicated region
  $region10: #{simple_model_forward.1} parent=0 // pred_check
    _
  $region11: #{simple_model_forward.1} parent=0 // pred_check_branch
    %13 = sbr.rel (0) target = $region13
  $region12: #{simple_model_forward.1} parent=0 // pred_region
    _
  $region13: #{simple_model_forward.1} parent=0 // pred_fallthru
    _
  %v14 = vld [vmem:[%s1] sm:$0x3]
  %v15 = vld [vmem:[%s0] sm:$0xff]
  %v16 = vld [vmem:[%s0 + $0x8] sm:$0xff]
  %v17 = vld [vmem:[%s2] sm:$0x3]
  %19 = vset.pattern.permute.xlu0 0
  %20 = vperm.xlu0 %19, %v17
  %v21 = vpop.permute.xlu0 %20
  %vm23 = vcmask 80896
  %v25 = vsel %vm23, %v14, 0
  %v28 = vsel %vm23, %v15, 0
  %v31 = vsel %vm23, %v16, 0
  %33 = vmatprep.subr.mxu0 0.0
  %34 = vmatpush1.xpose.msra.mxu0 %v28
  %35 = vmatprep.subr.mxu0 0.0
  %36 = vmatpush1.xpose.msra.mxu0 %v31
  %37 = vmatprep.subr.mxu0 0.0
  %38 = vmatpush1.xpose.msra.mxu0 0.0
  %39 = vmatprep.subr.mxu0 0.0
  %40 = vmatpush1.xpose.msra.mxu0 0.0
  %41 = vmatprep.subr.mxu0 0.0
  %42 = vmatpush1.xpose.msra.mxu0 0.0
  %43 = vmatprep.subr.mxu0 0.0
  %44 = vmatpush1.xpose.msra.mxu0 0.0
  %45 = vmatprep.subr.mxu0 0.0
  %46 = vmatpush1.xpose.msra.mxu0 0.0
  %47 = vmatprep.subr.mxu0 0.0
  %48 = vmatpush1.xpose.msra.mxu0 0.0
  %49 = vmatprep.subr.mxu0 0.0
  %50 = vmatpush1.xpose.msra.mxu0 0.0
  %51 = vmatprep.subr.mxu0 0.0
  %52 = vmatpush1.xpose.msra.mxu0 0.0
  %53 = vmatprep.subr.mxu0 0.0
  %54 = vmatpush1.xpose.msra.mxu0 0.0
  %55 = vmatprep.subr.mxu0 0.0
  %56 = vmatpush1.xpose.msra.mxu0 0.0
  %57 = vmatprep.subr.mxu0 0.0
  %58 = vmatpush1.xpose.msra.mxu0 0.0
  %59 = vmatprep.subr.mxu0 0.0
  %60 = vmatpush1.xpose.msra.mxu0 0.0
  %61 = vmatprep.subr.mxu0 0.0
  %62 = vmatpush1.xpose.msra.mxu0 0.0
  %63 = vmatprep.subr.mxu0 0.0
  %64 = vmatpush1.xpose.msra.mxu0 0.0
  %65 = vmatprep.subr.mxu0 0.0
  %66 = vmatpush1.xpose.msra.mxu0 0.0
  %67 = vmatprep.subr.mxu0 0.0
  %68 = vmatpush1.xpose.msra.mxu0 0.0
  %69 = vmatprep.subr.mxu0 0.0
  %70 = vmatpush1.xpose.msra.mxu0 0.0
  %71 = vmatprep.subr.mxu0 0.0
  %72 = vmatpush1.xpose.msra.mxu0 0.0
  %73 = vmatprep.subr.mxu0 0.0
  %74 = vmatpush1.xpose.msra.mxu0 0.0
  %75 = vmatprep.subr.mxu0 0.0
  %76 = vmatpush1.xpose.msra.mxu0 0.0
  %77 = vmatprep.subr.mxu0 0.0
  %78 = vmatpush1.xpose.msra.mxu0 0.0
  %79 = vmatprep.subr.mxu0 0.0
  %80 = vmatpush1.xpose.msra.mxu0 0.0
  %81 = vmatprep.subr.mxu0 0.0
  %82 = vmatpush1.xpose.msra.mxu0 0.0
  %83 = vmatprep.subr.mxu0 0.0
  %84 = vmatpush1.xpose.msra.mxu0 0.0
  %85 = vmatprep.subr.mxu0 0.0
  %86 = vmatpush1.xpose.msra.mxu0 0.0
  %87 = vmatprep.subr.mxu0 0.0
  %88 = vmatpush1.xpose.msra.mxu0 0.0
  %89 = vmatprep.subr.mxu0 0.0
  %90 = vmatpush1.xpose.msra.mxu0 0.0
  %91 = vmatprep.subr.mxu0 0.0
  %92 = vmatpush1.xpose.msra.mxu0 0.0
  %93 = vmatprep.subr.mxu0 0.0
  %94 = vmatpush1.xpose.msra.mxu0 0.0
  %95 = vmatprep.subr.mxu0 0.0
  %96 = vmatpush1.xpose.msra.mxu0 0.0
  %97 = vmatprep.mubr.f32.mxu0 0.0
  %98 = vmatmul.mubr.f32.gmra.mrb[0].mxu0 %v25
  %v99 = vpop.f32.mrb[0].mxu0
  %v100 = vadd.f32 %v21, %v99
  %v101 = vpop.f32.mrb[0].mxu0
  %102 = vdwg.mxu0
  %vm103 = vcmask 123904
  %104 = vst.msk [vmem:[%s3] sm:$0x3] %vm103, %v100
  // Predicated region
  $region14: #{simple_model_forward.1} parent=0 // pred_check
    _
  $region15: #{simple_model_forward.1} parent=0 // pred_check_branch
    %106 = sbr.rel (0) target = $region17
  $region16: #{simple_model_forward.1} parent=0 // pred_region
    _
  $region17: #{simple_model_forward.1} parent=0 // pred_fallthru
    _
  // Predicated region
  $region18: #{simple_model_forward.1} parent=0 // pred_check
    _
  $region19: #{simple_model_forward.1} parent=0 // pred_check_branch
    %108 = sbr.rel (0) target = $region21
  $region20: #{simple_model_forward.1} parent=0 // pred_region
    _
  $region21: #{simple_model_forward.1} parent=0 // pred_fallthru
    _

</llo_original>
